<compile_context>
chip_gen: v7x
topology: tpu7x:2x2x1
jax: 0.10.0
libtpu: 0.0.40
codegen_flags: <defaults>
</compile_context>

<pallas_src>
import functools

import jax
import jax.numpy as jnp
from jax import lax
from jax.experimental import pallas as pl
from jax.experimental.pallas import tpu as pltpu


def _choose_tile(dim, target, align):
    """Largest multiple of `align` dividing `dim` that is <= target, else `dim`.

    Returning `dim` (full extent) always satisfies the (8,128) block constraint.
    """
    if dim <= target:
        return dim
    t = (target // align) * align
    while t >= align:
        if dim % t == 0:
            return t
        t -= align
    return dim


# ----------------------------------------------------------------------------
# Tiled matmul with K-axis accumulation (P1 + P3 + P9)
# ----------------------------------------------------------------------------
def _matmul_kernel(x_ref, w_ref, o_ref, acc_ref):
    @pl.when(pl.program_id(2) == 0)
    def _init():
        acc_ref[...] = jnp.zeros_like(acc_ref)

    acc_ref[...] += jnp.dot(
        x_ref[...], w_ref[...], preferred_element_type=jnp.float32
    )

    @pl.when(pl.program_id(2) == pl.num_programs(2) - 1)
    def _store():
        o_ref[...] = acc_ref[...].astype(o_ref.dtype)


def pallas_matmul(x, w, *, tm=256, tn=256, tk=512):
    """[M, K] @ [K, N] -> [M, N], pipelined over a 3-D grid."""
    M, K = x.shape
    K2, N = w.shape
    assert K == K2
    tm = _choose_tile(M, tm, 8)
    tn = _choose_tile(N, tn, 128)
    tk = _choose_tile(K, tk, 128)
    grid = (M // tm, N // tn, K // tk)
    itemsize = jnp.dtype(x.dtype).itemsize
    cost = pl.CostEstimate(
        flops=2 * M * N * K,
        transcendentals=0,
        bytes_accessed=(M * K + K * N + M * N) * itemsize,
    )
    return pl.pallas_call(
        _matmul_kernel,
        out_shape=jax.ShapeDtypeStruct((M, N), x.dtype),
        grid_spec=pltpu.PrefetchScalarGridSpec(
            num_scalar_prefetch=0,
            grid=grid,
            in_specs=[
                pl.BlockSpec((tm, tk), lambda i, j, k: (i, k)),
                pl.BlockSpec((tk, tn), lambda i, j, k: (k, j)),
            ],
            out_specs=pl.BlockSpec((tm, tn), lambda i, j, k: (i, j)),
            scratch_shapes=[pltpu.VMEM((tm, tn), jnp.float32)],
        ),
        compiler_params=pltpu.CompilerParams(
            dimension_semantics=("parallel", "parallel", "arbitrary"),
            vmem_limit_bytes=32 * 1024 * 1024,
        ),
        cost_estimate=cost,
    )(x, w)


# ----------------------------------------------------------------------------
# Flash-style causal attention (online softmax, kv-tile pruning + DMA elision)
# ----------------------------------------------------------------------------
def _flash_attn_kernel(q_ref, k_ref, v_ref, o_ref, m_sc, l_sc, acc_sc, *, scale):
    tq = q_ref.shape[1]
    tkv = k_ref.shape[1]
    qi = pl.program_id(1)
    ki = pl.program_id(2)

    @pl.when(ki == 0)
    def _init():
        # Large finite negative (not -inf) so fully-masked rows of later kv
        # tiles never produce inf-inf NaNs.
        m_sc[...] = jnp.full_like(m_sc, -1e30)
        l_sc[...] = jnp.zeros_like(l_sc)
        acc_sc[...] = jnp.zeros_like(acc_sc)

    q_start = qi * tq
    kv_start = ki * tkv

    # Skip kv tiles lying entirely above the causal diagonal (~2x fewer tiles).
    # Their DMA is also elided by the index_map remapping in the wrapper.
    @pl.when(kv_start <= q_start + (tq - 1))
    def _compute():
        q = q_ref[0]  # [tq, D]
        k = k_ref[0]  # [tkv, D]
        v = v_ref[0]  # [tkv, D]

        # QK^T with the transpose folded into dot_general (no materialized k.T).
        s = lax.dot_general(
            q, k, (((1,), (1,)), ((), ())),
            preferred_element_type=jnp.float32,
        ) * scale                                                  # [tq, tkv]

        row = q_start + lax.broadcasted_iota(jnp.int32, (tq, tkv), 0)
        col = kv_start + lax.broadcasted_iota(jnp.int32, (tq, tkv), 1)
        s = jnp.where(col <= row, s, -1e30)                         # causal mask

        m_prev = m_sc[...]
        m_new = jnp.maximum(m_prev, jnp.max(s, axis=-1, keepdims=True))
        alpha = jnp.exp(m_prev - m_new)
        p = jnp.exp(s - m_new)

        l_sc[...] = alpha * l_sc[...] + jnp.sum(p, axis=-1, keepdims=True)
        # Deferred normalization: accumulate un-normalized P @ V.
        acc_sc[...] = alpha * acc_sc[...] + jnp.dot(
            p.astype(v.dtype), v, preferred_element_type=jnp.float32
        )
        m_sc[...] = m_new

    @pl.when(ki == pl.num_programs(2) - 1)
    def _finalize():
        # Scale the [tq, D] accumulator instead of dividing the [tq, tkv] probs.
        inv_l = pl.reciprocal(l_sc[...], approx=False)
        o_ref[0] = (acc_sc[...] * inv_l).astype(o_ref.dtype)


def pallas_causal_attention(q, k, v, scale, *, tq=256, tkv=256):
    """q, k, v: [num_heads, T, D] -> [num_heads, T, D]."""
    nh, T, D = q.shape
    tq = _choose_tile(T, tq, 8)
    tkv = _choose_tile(T, tkv, 8)
    grid = (nh, T // tq, T // tkv)

    kernel = functools.partial(_flash_attn_kernel, scale=scale)

    qo_spec = pl.BlockSpec((1, tq, D), lambda h, i, j: (h, i, 0))

    def kv_index_map(h, i, j):
        # NEW: kv tiles that lie fully above the causal diagonal are skipped in
        # the kernel (pl.when).  Remap their block index to 0 so (a) the
        # pipeline does not spend HBM bandwidth fetching data that is never
        # read, and (b) block 0 of the *next* q row is effectively prefetched.
        below_or_on_diag = (j * tkv) <= (i * tq + (tq - 1))
        return (h, jnp.where(below_or_on_diag, j, 0), 0)

    kv_spec = pl.BlockSpec((1, tkv, D), kv_index_map)

    itemsize = jnp.dtype(q.dtype).itemsize
    cost = pl.CostEstimate(
        flops=2 * nh * T * T * D,           # QK^T + PV, ~causal half
        transcendentals=nh * T * T // 2,
        bytes_accessed=4 * nh * T * D * itemsize,
    )
    return pl.pallas_call(
        kernel,
        out_shape=jax.ShapeDtypeStruct((nh, T, D), q.dtype),
        grid_spec=pltpu.PrefetchScalarGridSpec(
            num_scalar_prefetch=0,
            grid=grid,
            in_specs=[qo_spec, kv_spec, kv_spec],
            out_specs=qo_spec,
            scratch_shapes=[
                pltpu.VMEM((tq, 1), jnp.float32),   # running max m
                pltpu.VMEM((tq, 1), jnp.float32),   # running denom l
                pltpu.VMEM((tq, D), jnp.float32),   # un-normalized output acc
            ],
        ),
        compiler_params=pltpu.CompilerParams(
            dimension_semantics=("parallel", "parallel", "arbitrary"),
            vmem_limit_bytes=32 * 1024 * 1024,
        ),
        cost_estimate=cost,
    )(q, k, v)


# ----------------------------------------------------------------------------
# GPT-J (interleaved / rotate_every_two) rotary embedding — plain JAX glue
# ----------------------------------------------------------------------------
def gptj_rope(x, positions, rotary_dim, base=10000.0):
    """x: [T, num_heads, head_size]; GPT-J 'rotate_every_two' style RoPE."""
    inv_freq = 1.0 / (
        base ** (jnp.arange(0, rotary_dim, 2, dtype=jnp.float32) / rotary_dim)
    )
    sinusoid = positions.astype(jnp.float32)[:, None] * inv_freq[None, :]  # [T, rd/2]
    sin = jnp.repeat(jnp.sin(sinusoid), 2, axis=-1)[:, None, :]            # [T, 1, rd]
    cos = jnp.repeat(jnp.cos(sinusoid), 2, axis=-1)[:, None, :]            # [T, 1, rd]

    x_rot = x[..., :rotary_dim]
    x_pass = x[..., rotary_dim:]
    x1 = x_rot[..., 0::2]
    x2 = x_rot[..., 1::2]
    rotated = jnp.stack([-x2, x1], axis=-1).reshape(x_rot.shape)
    x_rot = x_rot * cos + rotated * sin
    return jnp.concatenate([x_rot.astype(x.dtype), x_pass], axis=-1)


# ----------------------------------------------------------------------------
# GPTJAttention forward
# ----------------------------------------------------------------------------
def gptj_attention(positions, hidden_states, w_qkv, w_out, num_heads, rotary_dim):
    T, H = hidden_states.shape
    head_size = H // num_heads
    scale = head_size ** (-0.5)

    # qkv_proj (tiled Pallas matmul)
    qkv = pallas_matmul(hidden_states, w_qkv)        # [T, 3H]
    q, k, v = jnp.split(qkv, 3, axis=-1)             # each [T, H]

    q = gptj_rope(q.reshape(T, num_heads, head_size), positions, rotary_dim)
    k = gptj_rope(k.reshape(T, num_heads, head_size), positions, rotary_dim)
    v = v.reshape(T, num_heads, head_size)

    # attention (flash-style Pallas kernel over heads x q-tiles x kv-tiles)
    qh = jnp.transpose(q, (1, 0, 2))                 # [nh, T, hs]
    kh = jnp.transpose(k, (1, 0, 2))
    vh = jnp.transpose(v, (1, 0, 2))
    oh = pallas_causal_attention(qh, kh, vh, scale)  # [nh, T, hs]
    attn_out = jnp.transpose(oh, (1, 0, 2)).reshape(T, H)

    # out_proj (tiled Pallas matmul)
    return pallas_matmul(attn_out, w_out)            # [T, H]


# ----------------------------------------------------------------------------
# Pure-JAX reference (for correctness check)
# ----------------------------------------------------------------------------
def gptj_attention_ref(positions, hidden_states, w_qkv, w_out, num_heads, rotary_dim):
    T, H = hidden_states.shape
    head_size = H // num_heads
    scale = head_size ** (-0.5)
    qkv = hidden_states @ w_qkv
    q, k, v = jnp.split(qkv, 3, axis=-1)
    q = gptj_rope(q.reshape(T, num_heads, head_size), positions, rotary_dim)
    k = gptj_rope(k.reshape(T, num_heads, head_size), positions, rotary_dim)
    v = v.reshape(T, num_heads, head_size)
    s = jnp.einsum("qhd,khd->hqk", q, k) * scale
    mask = jnp.tril(jnp.ones((T, T), dtype=bool))
    s = jnp.where(mask[None], s, -jnp.inf)
    p = jax.nn.softmax(s, axis=-1)
    o = jnp.einsum("hqk,khd->qhd", p, v).reshape(T, H)
    return o @ w_out


# ----------------------------------------------------------------------------
if __name__ == "__main__":
    # Small GPT-J-like config: hidden=32, heads=4, head_size=8, rotary_dim=4, seq=8
    T = 8
    hidden_size = 32
    num_heads = 4
    rotary_dim = 4

    key = jax.random.PRNGKey(0)
    k1, k2, k3 = jax.random.split(key, 3)
    hidden_states = jax.random.normal(k1, (T, hidden_size), dtype=jnp.float32)
    w_qkv = 0.02 * jax.random.normal(k2, (hidden_size, 3 * hidden_size), jnp.float32)
    w_out = 0.02 * jax.random.normal(k3, (hidden_size, hidden_size), jnp.float32)
    positions = jnp.arange(T, dtype=jnp.int32)

    fwd = jax.jit(
        functools.partial(gptj_attention, num_heads=num_heads, rotary_dim=rotary_dim)
    )
    out = fwd(positions, hidden_states, w_qkv, w_out)
    out = jax.block_until_ready(out)

    ref = gptj_attention_ref(
        positions, hidden_states, w_qkv, w_out, num_heads, rotary_dim
    )
    assert out.shape == (T, hidden_size)
    assert jnp.allclose(out, ref, atol=1e-4, rtol=1e-4), "mismatch vs reference"

    print("KERNEL_OK")
</pallas_src>

<mosaic_0001>
module attributes {stable_mosaic.version = 11 : i64} {
  func.func @_matmul_kernel(%arg0: i32, %arg1: i32, %arg2: i32, %arg3: memref<8x32xf32, #tpu.memory_space<vmem>>, %arg4: memref<32x96xf32, #tpu.memory_space<vmem>>, %arg5: memref<8x96xf32, #tpu.memory_space<vmem>>, %arg6: memref<8x96xf32, #tpu.memory_space<vmem>>) attributes {dimension_semantics = [#tpu.dimension_semantics<parallel>, #tpu.dimension_semantics<parallel>, #tpu.dimension_semantics<arbitrary>], iteration_bounds = array<i64: 1, 1, 1>, scalar_prefetch = 0 : i64, scratch_operands = 1 : i64, tpu.core_type = #tpu.core_type<tc>, window_params = [{transform_indices = @transform_0, window_bounds = array<i64: 8, 32>}, {transform_indices = @transform_1, window_bounds = array<i64: 32, 96>}, {transform_indices = @transform_2, window_bounds = array<i64: 8, 96>}]} {
    %c0_i32 = arith.constant 0 : i32
    %0 = arith.cmpi eq, %arg2, %c0_i32 : i32
    %1 = arith.extui %0 : i1 to i32
    %c0_i32_0 = arith.constant 0 : i32
    %2 = arith.cmpi ne, %1, %c0_i32_0 : i32
    scf.if %2 {
      %cst_10 = arith.constant 0.000000e+00 : f32
      %12 = vector.broadcast %cst_10 : f32 to vector<8x96xf32>
      %c0_11 = arith.constant 0 : index
      %c0_12 = arith.constant 0 : index
      %13 = vector.load %arg6[%c0_11, %c0_12] : memref<8x96xf32, #tpu.memory_space<vmem>>, vector<8x96xf32>
      tpu.vector_store %arg6[%c0_11, %c0_12], %12 {strides = array<i32>} : memref<8x96xf32, #tpu.memory_space<vmem>>, vector<8x96xf32>,
    } else {
    }
    %c0 = arith.constant 0 : index
    %c0_1 = arith.constant 0 : index
    %3 = vector.load %arg6[%c0, %c0_1] : memref<8x96xf32, #tpu.memory_space<vmem>>, vector<8x96xf32>
    %c0_2 = arith.constant 0 : index
    %c0_3 = arith.constant 0 : index
    %4 = vector.load %arg3[%c0_2, %c0_3] : memref<8x32xf32, #tpu.memory_space<vmem>>, vector<8x32xf32>
    %c0_4 = arith.constant 0 : index
    %c0_5 = arith.constant 0 : index
    %5 = vector.load %arg4[%c0_4, %c0_5] : memref<32x96xf32, #tpu.memory_space<vmem>>, vector<32x96xf32>
    %cst = arith.constant dense<0.000000e+00> : vector<8x96xf32>
    %6 = tpu.matmul %4, %5, %cst {dimension_numbers = #tpu.dot_dimension_numbers<[1], [0], [0], [1], [0, 0, 1, 1], [], []>} : vector<8x32xf32>, vector<32x96xf32>, vector<8x96xf32> -> vector<8x96xf32>
    %7 = arith.addf %3, %6 : vector<8x96xf32>
    %c0_6 = arith.constant 0 : index
    %c0_7 = arith.constant 0 : index
    %8 = vector.load %arg6[%c0_6, %c0_7] : memref<8x96xf32, #tpu.memory_space<vmem>>, vector<8x96xf32>
    tpu.vector_store %arg6[%c0_6, %c0_7], %7 {strides = array<i32>} : memref<8x96xf32, #tpu.memory_space<vmem>>, vector<8x96xf32>,
    %c0_i32_8 = arith.constant 0 : i32
    %9 = arith.cmpi eq, %arg2, %c0_i32_8 : i32
    %10 = arith.extui %9 : i1 to i32
    %c0_i32_9 = arith.constant 0 : i32
    %11 = arith.cmpi ne, %10, %c0_i32_9 : i32
    scf.if %11 {
      %c0_10 = arith.constant 0 : index
      %c0_11 = arith.constant 0 : index
      %12 = vector.load %arg6[%c0_10, %c0_11] : memref<8x96xf32, #tpu.memory_space<vmem>>, vector<8x96xf32>
      %c0_12 = arith.constant 0 : index
      %c0_13 = arith.constant 0 : index
      %13 = vector.load %arg5[%c0_12, %c0_13] : memref<8x96xf32, #tpu.memory_space<vmem>>, vector<8x96xf32>
      tpu.vector_store %arg5[%c0_12, %c0_13], %12 {strides = array<i32>} : memref<8x96xf32, #tpu.memory_space<vmem>>, vector<8x96xf32>,
    } else {
    }
    return
  }
  func.func @transform_0(%arg0: i32, %arg1: i32, %arg2: i32) -> (i32, i32) {
    %c0_i32 = arith.constant 0 : i32
    return %arg0, %arg2 : i32, i32
  }
  func.func @transform_1(%arg0: i32, %arg1: i32, %arg2: i32) -> (i32, i32) {
    %c0_i32 = arith.constant 0 : i32
    return %arg2, %arg1 : i32, i32
  }
  func.func @transform_2(%arg0: i32, %arg1: i32, %arg2: i32) -> (i32, i32) {
    %c0_i32 = arith.constant 0 : i32
    return %arg0, %arg1 : i32, i32
  }
}

module attributes {stable_mosaic.version = 11 : i64} {
  func.func @_matmul_kernel(%arg0: i32, %arg1: i32, %arg2: i32, %arg3: memref<8x32xf32, #tpu.memory_space<vmem>>, %arg4: memref<32x32xf32, #tpu.memory_space<vmem>>, %arg5: memref<8x32xf32, #tpu.memory_space<vmem>>, %arg6: memref<8x32xf32, #tpu.memory_space<vmem>>) attributes {dimension_semantics = [#tpu.dimension_semantics<parallel>, #tpu.dimension_semantics<parallel>, #tpu.dimension_semantics<arbitrary>], iteration_bounds = array<i64: 1, 1, 1>, scalar_prefetch = 0 : i64, scratch_operands = 1 : i64, tpu.core_type = #tpu.core_type<tc>, window_params = [{transform_indices = @transform_0, window_bounds = array<i64: 8, 32>}, {transform_indices = @transform_1, window_bounds = array<i64: 32, 32>}, {transform_indices = @transform_2, window_bounds = array<i64: 8, 32>}]} {
    %c0_i32 = arith.constant 0 : i32
    %0 = arith.cmpi eq, %arg2, %c0_i32 : i32
    %1 = arith.extui %0 : i1 to i32
    %c0_i32_0 = arith.constant 0 : i32
    %2 = arith.cmpi ne, %1, %c0_i32_0 : i32
    scf.if %2 {
      %cst_10 = arith.constant 0.000000e+00 : f32
      %12 = vector.broadcast %cst_10 : f32 to vector<8x32xf32>
      %c0_11 = arith.constant 0 : index
      %c0_12 = arith.constant 0 : index
      %13 = vector.load %arg6[%c0_11, %c0_12] : memref<8x32xf32, #tpu.memory_space<vmem>>, vector<8x32xf32>
      tpu.vector_store %arg6[%c0_11, %c0_12], %12 {strides = array<i32>} : memref<8x32xf32, #tpu.memory_space<vmem>>, vector<8x32xf32>,
    } else {
    }
    %c0 = arith.constant 0 : index
    %c0_1 = arith.constant 0 : index
    %3 = vector.load %arg6[%c0, %c0_1] : memref<8x32xf32, #tpu.memory_space<vmem>>, vector<8x32xf32>
    %c0_2 = arith.constant 0 : index
    %c0_3 = arith.constant 0 : index
    %4 = vector.load %arg3[%c0_2, %c0_3] : memref<8x32xf32, #tpu.memory_space<vmem>>, vector<8x32xf32>
    %c0_4 = arith.constant 0 : index
    %c0_5 = arith.constant 0 : index
    %5 = vector.load %arg4[%c0_4, %c0_5] : memref<32x32xf32, #tpu.memory_space<vmem>>, vector<32x32xf32>
    %cst = arith.constant dense<0.000000e+00> : vector<8x32xf32>
    %6 = tpu.matmul %4, %5, %cst {dimension_numbers = #tpu.dot_dimension_numbers<[1], [0], [0], [1], [0, 0, 1, 1], [], []>} : vector<8x32xf32>, vector<32x32xf32>, vector<8x32xf32> -> vector<8x32xf32>
    %7 = arith.addf %3, %6 : vector<8x32xf32>
    %c0_6 = arith.constant 0 : index
    %c0_7 = arith.constant 0 : index
    %8 = vector.load %arg6[%c0_6, %c0_7] : memref<8x32xf32, #tpu.memory_space<vmem>>, vector<8x32xf32>
    tpu.vector_store %arg6[%c0_6, %c0_7], %7 {strides = array<i32>} : memref<8x32xf32, #tpu.memory_space<vmem>>, vector<8x32xf32>,
    %c0_i32_8 = arith.constant 0 : i32
    %9 = arith.cmpi eq, %arg2, %c0_i32_8 : i32
    %10 = arith.extui %9 : i1 to i32
    %c0_i32_9 = arith.constant 0 : i32
    %11 = arith.cmpi ne, %10, %c0_i32_9 : i32
    scf.if %11 {
      %c0_10 = arith.constant 0 : index
      %c0_11 = arith.constant 0 : index
      %12 = vector.load %arg6[%c0_10, %c0_11] : memref<8x32xf32, #tpu.memory_space<vmem>>, vector<8x32xf32>
      %c0_12 = arith.constant 0 : index
      %c0_13 = arith.constant 0 : index
      %13 = vector.load %arg5[%c0_12, %c0_13] : memref<8x32xf32, #tpu.memory_space<vmem>>, vector<8x32xf32>
      tpu.vector_store %arg5[%c0_12, %c0_13], %12 {strides = array<i32>} : memref<8x32xf32, #tpu.memory_space<vmem>>, vector<8x32xf32>,
    } else {
    }
    return
  }
  func.func @transform_0(%arg0: i32, %arg1: i32, %arg2: i32) -> (i32, i32) {
    %c0_i32 = arith.constant 0 : i32
    return %arg0, %arg2 : i32, i32
  }
  func.func @transform_1(%arg0: i32, %arg1: i32, %arg2: i32) -> (i32, i32) {
    %c0_i32 = arith.constant 0 : i32
    return %arg2, %arg1 : i32, i32
  }
  func.func @transform_2(%arg0: i32, %arg1: i32, %arg2: i32) -> (i32, i32) {
    %c0_i32 = arith.constant 0 : i32
    return %arg0, %arg1 : i32, i32
  }
}

module attributes {stable_mosaic.version = 11 : i64} {
  func.func @_flash_attn_kernel(%arg0: i32, %arg1: i32, %arg2: i32, %arg3: memref<1x8x8xf32, #tpu.memory_space<vmem>>, %arg4: memref<1x8x8xf32, #tpu.memory_space<vmem>>, %arg5: memref<1x8x8xf32, #tpu.memory_space<vmem>>, %arg6: memref<1x8x8xf32, #tpu.memory_space<vmem>>, %arg7: memref<8x1xf32, #tpu.memory_space<vmem>>, %arg8: memref<8x1xf32, #tpu.memory_space<vmem>>, %arg9: memref<8x8xf32, #tpu.memory_space<vmem>>) attributes {dimension_semantics = [#tpu.dimension_semantics<parallel>, #tpu.dimension_semantics<parallel>, #tpu.dimension_semantics<arbitrary>], iteration_bounds = array<i64: 4, 1, 1>, scalar_prefetch = 0 : i64, scratch_operands = 3 : i64, tpu.core_type = #tpu.core_type<tc>, window_params = [{transform_indices = @transform_0, window_bounds = array<i64: 1, 8, 8>}, {transform_indices = @transform_1, window_bounds = array<i64: 1, 8, 8>}, {transform_indices = @transform_2, window_bounds = array<i64: 1, 8, 8>}, {transform_indices = @transform_3, window_bounds = array<i64: 1, 8, 8>}]} {
    %c0_i32 = arith.constant 0 : i32
    %0 = arith.cmpi eq, %arg2, %c0_i32 : i32
    %1 = arith.extui %0 : i1 to i32
    %c0_i32_0 = arith.constant 0 : i32
    %2 = arith.cmpi ne, %1, %c0_i32_0 : i32
    scf.if %2 {
      %cst = arith.constant -1.000000e+30 : f32
      %12 = vector.broadcast %cst : f32 to vector<8x1xf32>
      %c0 = arith.constant 0 : index
      %c0_5 = arith.constant 0 : index
      %13 = vector.load %arg7[%c0, %c0_5] : memref<8x1xf32, #tpu.memory_space<vmem>>, vector<8x1xf32>
      tpu.vector_store %arg7[%c0, %c0_5], %12 {strides = array<i32>} : memref<8x1xf32, #tpu.memory_space<vmem>>, vector<8x1xf32>,
      %cst_6 = arith.constant 0.000000e+00 : f32
      %14 = vector.broadcast %cst_6 : f32 to vector<8x1xf32>
      %c0_7 = arith.constant 0 : index
      %c0_8 = arith.constant 0 : index
      %15 = vector.load %arg8[%c0_7, %c0_8] : memref<8x1xf32, #tpu.memory_space<vmem>>, vector<8x1xf32>
      tpu.vector_store %arg8[%c0_7, %c0_8], %14 {strides = array<i32>} : memref<8x1xf32, #tpu.memory_space<vmem>>, vector<8x1xf32>,
      %cst_9 = arith.constant 0.000000e+00 : f32
      %16 = vector.broadcast %cst_9 : f32 to vector<8x8xf32>
      %c0_10 = arith.constant 0 : index
      %c0_11 = arith.constant 0 : index
      %17 = vector.load %arg9[%c0_10, %c0_11] : memref<8x8xf32, #tpu.memory_space<vmem>>, vector<8x8xf32>
      tpu.vector_store %arg9[%c0_10, %c0_11], %16 {strides = array<i32>} : memref<8x8xf32, #tpu.memory_space<vmem>>, vector<8x8xf32>,
    } else {
    }
    %c8_i32 = arith.constant 8 : i32
    %3 = arith.muli %arg1, %c8_i32 : i32
    %c8_i32_1 = arith.constant 8 : i32
    %4 = arith.muli %arg2, %c8_i32_1 : i32
    %c7_i32 = arith.constant 7 : i32
    %5 = arith.addi %3, %c7_i32 : i32
    %6 = arith.cmpi sle, %4, %5 : i32
    %7 = arith.extui %6 : i1 to i32
    %c0_i32_2 = arith.constant 0 : i32
    %8 = arith.cmpi ne, %7, %c0_i32_2 : i32
    scf.if %8 {
      %c0 = arith.constant 0 : index
      %c0_5 = arith.constant 0 : index
      %c0_6 = arith.constant 0 : index
      %12 = vector.load %arg3[%c0, %c0_5, %c0_6] : memref<1x8x8xf32, #tpu.memory_space<vmem>>, vector<1x8x8xf32>
      %13 = vector.shape_cast %12 : vector<1x8x8xf32> to vector<8x8xf32>
      %c0_7 = arith.constant 0 : index
      %c0_8 = arith.constant 0 : index
      %c0_9 = arith.constant 0 : index
      %14 = vector.load %arg4[%c0_7, %c0_8, %c0_9] : memref<1x8x8xf32, #tpu.memory_space<vmem>>, vector<1x8x8xf32>
      %15 = vector.shape_cast %14 : vector<1x8x8xf32> to vector<8x8xf32>
      %c0_10 = arith.constant 0 : index
      %c0_11 = arith.constant 0 : index
      %c0_12 = arith.constant 0 : index
      %16 = vector.load %arg5[%c0_10, %c0_11, %c0_12] : memref<1x8x8xf32, #tpu.memory_space<vmem>>, vector<1x8x8xf32>
      %17 = vector.shape_cast %16 : vector<1x8x8xf32> to vector<8x8xf32>
      %cst = arith.constant dense<0.000000e+00> : vector<8x8xf32>
      %18 = tpu.matmul %13, %15, %cst {dimension_numbers = #tpu.dot_dimension_numbers<[1], [1], [0], [0], [0, 0, 1, 0], [], []>} : vector<8x8xf32>, vector<8x8xf32>, vector<8x8xf32> -> vector<8x8xf32>
      %cst_13 = arith.constant 0.353553385 : f32
      %19 = vector.broadcast %cst_13 : f32 to vector<8x8xf32>
      %20 = arith.mulf %18, %19 : vector<8x8xf32>
      %21 = tpu.iota {dimensions = array<i32: 0>} : vector<8x8xi32>
      %22 = vector.broadcast %3 : i32 to vector<8x8xi32>
      %23 = arith.addi %22, %21 : vector<8x8xi32>
      %24 = tpu.iota {dimensions = array<i32: 1>} : vector<8x8xi32>
      %25 = vector.broadcast %4 : i32 to vector<8x8xi32>
      %26 = arith.addi %25, %24 : vector<8x8xi32>
      %27 = arith.cmpi sle, %26, %23 : vector<8x8xi32>
      %cst_14 = arith.constant -1.000000e+30 : f32
      %28 = vector.broadcast %cst_14 : f32 to vector<8x8xf32>
      %29 = arith.select %27, %20, %28 : vector<8x8xi1>, vector<8x8xf32>
      %c0_15 = arith.constant 0 : index
      %c0_16 = arith.constant 0 : index
      %30 = vector.load %arg7[%c0_15, %c0_16] : memref<8x1xf32, #tpu.memory_space<vmem>>, vector<8x1xf32>
      %cst_17 = arith.constant dense<0xFF800000> : vector<8xf32>
      %31 = vector.multi_reduction <maximumf>, %29, %cst_17 [1] : vector<8x8xf32> to vector<8xf32>
      %32 = vector.shape_cast %31 : vector<8xf32> to vector<8x1xf32>
      %33 = arith.maximumf %30, %32 : vector<8x1xf32>
      %34 = arith.subf %30, %33 : vector<8x1xf32>
      %35 = math.exp %34 : vector<8x1xf32>
      %36 = vector.broadcast %33 : vector<8x1xf32> to vector<8x8xf32>
      %37 = arith.subf %29, %36 : vector<8x8xf32>
      %38 = math.exp %37 : vector<8x8xf32>
      %c0_18 = arith.constant 0 : index
      %c0_19 = arith.constant 0 : index
      %39 = vector.load %arg8[%c0_18, %c0_19] : memref<8x1xf32, #tpu.memory_space<vmem>>, vector<8x1xf32>
      %40 = arith.mulf %35, %39 : vector<8x1xf32>
      %cst_20 = arith.constant dense<0.000000e+00> : vector<8xf32>
      %41 = vector.multi_reduction <add>, %38, %cst_20 [1] : vector<8x8xf32> to vector<8xf32>
      %42 = vector.shape_cast %41 : vector<8xf32> to vector<8x1xf32>
      %43 = arith.addf %40, %42 : vector<8x1xf32>
      %c0_21 = arith.constant 0 : index
      %c0_22 = arith.constant 0 : index
      %44 = vector.load %arg8[%c0_21, %c0_22] : memref<8x1xf32, #tpu.memory_space<vmem>>, vector<8x1xf32>
      tpu.vector_store %arg8[%c0_21, %c0_22], %43 {strides = array<i32>} : memref<8x1xf32, #tpu.memory_space<vmem>>, vector<8x1xf32>,
      %c0_23 = arith.constant 0 : index
      %c0_24 = arith.constant 0 : index
      %45 = vector.load %arg9[%c0_23, %c0_24] : memref<8x8xf32, #tpu.memory_space<vmem>>, vector<8x8xf32>
      %46 = vector.broadcast %35 : vector<8x1xf32> to vector<8x8xf32>
      %47 = arith.mulf %46, %45 : vector<8x8xf32>
      %cst_25 = arith.constant dense<0.000000e+00> : vector<8x8xf32>
      %48 = tpu.matmul %38, %17, %cst_25 {dimension_numbers = #tpu.dot_dimension_numbers<[1], [0], [0], [1], [0, 0, 1, 1], [], []>} : vector<8x8xf32>, vector<8x8xf32>, vector<8x8xf32> -> vector<8x8xf32>
      %49 = arith.addf %47, %48 : vector<8x8xf32>
      %c0_26 = arith.constant 0 : index
      %c0_27 = arith.constant 0 : index
      %50 = vector.load %arg9[%c0_26, %c0_27] : memref<8x8xf32, #tpu.memory_space<vmem>>, vector<8x8xf32>
      tpu.vector_store %arg9[%c0_26, %c0_27], %49 {strides = array<i32>} : memref<8x8xf32, #tpu.memory_space<vmem>>, vector<8x8xf32>,
      %c0_28 = arith.constant 0 : index
      %c0_29 = arith.constant 0 : index
      %51 = vector.load %arg7[%c0_28, %c0_29] : memref<8x1xf32, #tpu.memory_space<vmem>>, vector<8x1xf32>
      tpu.vector_store %arg7[%c0_28, %c0_29], %33 {strides = array<i32>} : memref<8x1xf32, #tpu.memory_space<vmem>>, vector<8x1xf32>,
    } else {
    }
    %c0_i32_3 = arith.constant 0 : i32
    %9 = arith.cmpi eq, %arg2, %c0_i32_3 : i32
    %10 = arith.extui %9 : i1 to i32
    %c0_i32_4 = arith.constant 0 : i32
    %11 = arith.cmpi ne, %10, %c0_i32_4 : i32
    scf.if %11 {
      %c0 = arith.constant 0 : index
      %c0_5 = arith.constant 0 : index
      %12 = vector.load %arg8[%c0, %c0_5] : memref<8x1xf32, #tpu.memory_space<vmem>>, vector<8x1xf32>
      %13 = tpu.reciprocal %12 : vector<8x1xf32> -> vector<8x1xf32>
      %c0_6 = arith.constant 0 : index
      %c0_7 = arith.constant 0 : index
      %14 = vector.load %arg9[%c0_6, %c0_7] : memref<8x8xf32, #tpu.memory_space<vmem>>, vector<8x8xf32>
      %15 = vector.broadcast %13 : vector<8x1xf32> to vector<8x8xf32>
      %16 = arith.mulf %14, %15 : vector<8x8xf32>
      %c0_8 = arith.constant 0 : index
      %c0_9 = arith.constant 0 : index
      %c0_10 = arith.constant 0 : index
      %17 = vector.load %arg6[%c0_8, %c0_9, %c0_10] : memref<1x8x8xf32, #tpu.memory_space<vmem>>, vector<1x8x8xf32>
      %18 = vector.shape_cast %17 : vector<1x8x8xf32> to vector<8x8xf32>
      %19 = vector.shape_cast %16 : vector<8x8xf32> to vector<1x8x8xf32>
      tpu.vector_store %arg6[%c0_8, %c0_9, %c0_10], %19 {strides = array<i32>} : memref<1x8x8xf32, #tpu.memory_space<vmem>>, vector<1x8x8xf32>,
    } else {
    }
    return
  }
  func.func @transform_0(%arg0: i32, %arg1: i32, %arg2: i32) -> (i32, i32, i32) {
    %c0_i32 = arith.constant 0 : i32
    %c0_i32_0 = arith.constant 0 : i32
    return %arg0, %arg1, %c0_i32 : i32, i32, i32
  }
  func.func @transform_1(%arg0: i32, %arg1: i32, %arg2: i32) -> (i32, i32, i32) {
    %c8_i32 = arith.constant 8 : i32
    %0 = arith.muli %arg2, %c8_i32 : i32
    %c8_i32_0 = arith.constant 8 : i32
    %1 = arith.muli %arg1, %c8_i32_0 : i32
    %c7_i32 = arith.constant 7 : i32
    %2 = arith.addi %1, %c7_i32 : i32
    %3 = arith.cmpi sle, %0, %2 : i32
    %c0_i32 = arith.constant 0 : i32
    %4 = arith.select %3, %arg2, %c0_i32 : i32
    %c0_i32_1 = arith.constant 0 : i32
    %c0_i32_2 = arith.constant 0 : i32
    return %arg0, %4, %c0_i32_1 : i32, i32, i32
  }
  func.func @transform_2(%arg0: i32, %arg1: i32, %arg2: i32) -> (i32, i32, i32) {
    %c8_i32 = arith.constant 8 : i32
    %0 = arith.muli %arg2, %c8_i32 : i32
    %c8_i32_0 = arith.constant 8 : i32
    %1 = arith.muli %arg1, %c8_i32_0 : i32
    %c7_i32 = arith.constant 7 : i32
    %2 = arith.addi %1, %c7_i32 : i32
    %3 = arith.cmpi sle, %0, %2 : i32
    %c0_i32 = arith.constant 0 : i32
    %4 = arith.select %3, %arg2, %c0_i32 : i32
    %c0_i32_1 = arith.constant 0 : i32
    %c0_i32_2 = arith.constant 0 : i32
    return %arg0, %4, %c0_i32_1 : i32, i32, i32
  }
  func.func @transform_3(%arg0: i32, %arg1: i32, %arg2: i32) -> (i32, i32, i32) {
    %c0_i32 = arith.constant 0 : i32
    %c0_i32_0 = arith.constant 0 : i32
    return %arg0, %arg1, %c0_i32 : i32, i32, i32
  }
}

</mosaic_0001>

<llo_original>
// kernel: gptj_attention.3
$region0: #{gptj_attention.3}
  #allocation0 [shape = 'u32[]', space=smem, size = 0x4, offset = 0x4, fixed_abs, tag = 'smem constant byte address 0x4 - core index']
  #allocation1 [shape = 'u32[144,128]{1,0:T(1,128)}', space=vmem, size = 0x12000, scoped, tag = 'internal scratch']
  #allocation2 [shape = 'f32[8,96]{1,0:T(8,128)}', space=vmem, size = 0x1000, scoped, tag = 'scratch operand']
  %s0 = inlined_call_operand.vmem [shape: f32[8,32], index: 0, kind: input, shape index: {}]
  %s1 = inlined_call_operand.hbm [shape: f32[32,96], index: 1, kind: input, shape index: {}]
  %s2 = inlined_call_operand.vmem [shape: f32[8,96], index: 2, kind: output, shape index: {}]
  %s3 = sld [smem:[#allocation0]]
  $region30: #{gptj_attention.3} parent=0
    _
  %s5 = ssub.s32 1, %s3
  %s6 = scalar_select 0, %s5, %s3
  $region1: #{gptj_attention.3} parent=0
    #allocation3 [shape = 'u8[16384]{0}', space=vmem, size = 0x4000, scoped, tag = 'input window, operand 1, single buffered']
    #allocation4 [shape = 's32[1]{0}', space=sflag, size = 0x4, scoped, tag = 'scoped memory for gptj_attention.3']
    %7 = vsyncpa [#allocation4], 0
    // Predicated region
    $region2: #{gptj_attention.3} parent=1 // pred_check
      _
    $region3: #{gptj_attention.3} parent=1 // pred_check_branch
      %9 = sbr.rel (0) target = $region5
    $region4: #{gptj_attention.3} parent=1 // pred_region
      _
    $region5: #{gptj_attention.3} parent=1 // pred_fallthru
      _
    // Predicated region
    $region6: #{gptj_attention.3} parent=1 // pred_check
      _
    $region7: #{gptj_attention.3} parent=1 // pred_check_branch
      %11 = sbr.rel (0) target = $region9
    $region8: #{gptj_attention.3} parent=1 // pred_region
      %s13 = ssub.s32 512, 512
      %14 = vsyncadd [#allocation4], %s13
      %s15 = sshll.u32 [#allocation3], 4
      %s16 = int_to_ptr.vmem [resolvable:$true] %s15
      %21 = dma.hbm_to_vmem [thread:$0]  %s1, 512, %s16, [#allocation4], 128, 128, 8
    $region9: #{gptj_attention.3} parent=1 // pred_fallthru
      _
    // Predicated region
    $region10: #{gptj_attention.3} parent=1 // pred_check
      _
    $region11: #{gptj_attention.3} parent=1 // pred_check_branch
      %23 = sbr.rel (0) target = $region13
    $region12: #{gptj_attention.3} parent=1 // pred_region
      %24 = dma.done [#allocation4], 512
    $region13: #{gptj_attention.3} parent=1 // pred_fallthru
      _
    %p25 = scmp.eq.s32.totalorder 0, 0
    // Predicated region
    $region14: #{gptj_attention.3} parent=1 // pred_check
      %p26 = pneg %p25
    $region15: #{gptj_attention.3} parent=1 // pred_check_branch
      %28 = sbr.rel (%p26) target = $region17
    $region16: #{gptj_attention.3} parent=1 // pred_region
      %vm29 = vcmask 785408
      %30 = vst.msk [vmem:[#allocation2] sm:$0xff] %vm29, 0.0
    $region17: #{gptj_attention.3} parent=1 // pred_fallthru
      _
    %v31 = vld [vmem:[#allocation2] sm:$0xff]
    %v32 = vld [vmem:[%s0] sm:$0xff]
    %v33 = vld [vmem:[#allocation3] sm:$0xff]
    %v34 = vld [vmem:[#allocation3 + $0x8] sm:$0xff]
    %v35 = vld [vmem:[#allocation3 + $0x10] sm:$0xff]
    %v36 = vld [vmem:[#allocation3 + $0x18] sm:$0xff]
    %vm37 = vcmask 261120
    %v39 = vsel %vm37, %v32, 0
    %41 = vmatprep.subr.mxu0 0.0
    %42 = vmatpush1.msra.mxu0 %v33
    %43 = vmatprep.subr.mxu0 0.0
    %44 = vmatpush1.msra.mxu0 %v34
    %45 = vmatprep.subr.mxu0 0.0
    %46 = vmatpush1.msra.mxu0 %v35
    %47 = vmatprep.subr.mxu0 0.0
    %48 = vmatpush1.msra.mxu0 %v36
    %49 = vmatprep.subr.mxu0 0.0
    %50 = vmatpush1.msra.mxu0 0.0
    %51 = vmatprep.subr.mxu0 0.0
    %52 = vmatpush1.msra.mxu0 0.0
    %53 = vmatprep.subr.mxu0 0.0
    %54 = vmatpush1.msra.mxu0 0.0
    %55 = vmatprep.subr.mxu0 0.0
    %56 = vmatpush1.msra.mxu0 0.0
    %57 = vmatprep.subr.mxu0 0.0
    %58 = vmatpush1.msra.mxu0 0.0
    %59 = vmatprep.subr.mxu0 0.0
    %60 = vmatpush1.msra.mxu0 0.0
    %61 = vmatprep.subr.mxu0 0.0
    %62 = vmatpush1.msra.mxu0 0.0
    %63 = vmatprep.subr.mxu0 0.0
    %64 = vmatpush1.msra.mxu0 0.0
    %65 = vmatprep.subr.mxu0 0.0
    %66 = vmatpush1.msra.mxu0 0.0
    %67 = vmatprep.subr.mxu0 0.0
    %68 = vmatpush1.msra.mxu0 0.0
    %69 = vmatprep.subr.mxu0 0.0
    %70 = vmatpush1.msra.mxu0 0.0
    %71 = vmatprep.subr.mxu0 0.0
    %72 = vmatpush1.msra.mxu0 0.0
    %73 = vmatprep.subr.mxu0 0.0
    %74 = vmatpush1.msra.mxu0 0.0
    %75 = vmatprep.subr.mxu0 0.0
    %76 = vmatpush1.msra.mxu0 0.0
    %77 = vmatprep.subr.mxu0 0.0
    %78 = vmatpush1.msra.mxu0 0.0
    %79 = vmatprep.subr.mxu0 0.0
    %80 = vmatpush1.msra.mxu0 0.0
    %81 = vmatprep.subr.mxu0 0.0
    %82 = vmatpush1.msra.mxu0 0.0
    %83 = vmatprep.subr.mxu0 0.0
    %84 = vmatpush1.msra.mxu0 0.0
    %85 = vmatprep.subr.mxu0 0.0
    %86 = vmatpush1.msra.mxu0 0.0
    %87 = vmatprep.subr.mxu0 0.0
    %88 = vmatpush1.msra.mxu0 0.0
    %89 = vmatprep.subr.mxu0 0.0
    %90 = vmatpush1.msra.mxu0 0.0
    %91 = vmatprep.subr.mxu0 0.0
    %92 = vmatpush1.msra.mxu0 0.0
    %93 = vmatprep.subr.mxu0 0.0
    %94 = vmatpush1.msra.mxu0 0.0
    %95 = vmatprep.subr.mxu0 0.0
    %96 = vmatpush1.msra.mxu0 0.0
    %97 = vmatprep.subr.mxu0 0.0
    %98 = vmatpush1.msra.mxu0 0.0
    %99 = vmatprep.subr.mxu0 0.0
    %100 = vmatpush1.msra.mxu0 0.0
    %101 = vmatprep.subr.mxu0 0.0
    %102 = vmatpush1.msra.mxu0 0.0
    %103 = vmatprep.subr.mxu0 0.0
    %104 = vmatpush1.msra.mxu0 0.0
    %105 = vmatprep.mubr.f32.mxu0 0.0
    %106 = vmatmul.mubr.f32.gmra.mrb[0].mxu0 %v39
    %v107 = vpop.f32.mrb[0].mxu0
    %v108 = vadd.f32 0.0, %v107
    %v109 = vpop.f32.mrb[0].mxu0
    %110 = vdwg.mxu0
    %v111 = vadd.f32 %v31, %v108
    %vm112 = vcmask 785408
    %113 = vst.msk [vmem:[#allocation2] sm:$0xff] %vm112, %v111
    // Predicated region
    $region18: #{gptj_attention.3} parent=1 // pred_check
      %p114 = pneg %p25
    $region19: #{gptj_attention.3} parent=1 // pred_check_branch
      %116 = sbr.rel (%p114) target = $region21
    $region20: #{gptj_attention.3} parent=1 // pred_region
      %v117 = vld [vmem:[#allocation2] sm:$0xff]
      %118 = vst.msk [vmem:[%s2] sm:$0xff] %vm112, %v117
    $region21: #{gptj_attention.3} parent=1 // pred_fallthru
      _
    // Predicated region
    $region22: #{gptj_attention.3} parent=1 // pred_check
      _
    $region23: #{gptj_attention.3} parent=1 // pred_check_branch
      %120 = sbr.rel (0) target = $region25
    $region24: #{gptj_attention.3} parent=1 // pred_region
      _
    $region25: #{gptj_attention.3} parent=1 // pred_fallthru
      _
    // Predicated region
    $region26: #{gptj_attention.3} parent=1 // pred_check
      _
    $region27: #{gptj_attention.3} parent=1 // pred_check_branch
      %122 = sbr.rel (0) target = $region29
    $region28: #{gptj_attention.3} parent=1 // pred_region
      _
    $region29: #{gptj_attention.3} parent=1 // pred_fallthru
      _
    %123 = vsyncpa [#allocation4], 1

// kernel: gptj_attention.5
$region0: #{gptj_attention.5}
  #allocation0 [shape = 'u32[]', space=smem, size = 0x4, offset = 0x4, fixed_abs, tag = 'smem constant byte address 0x4 - core index']
  #allocation1 [shape = 'u32[144,128]{1,0:T(1,128)}', space=vmem, size = 0x12000, scoped, tag = 'internal scratch']
  #allocation2 [shape = 'f32[8,32]{1,0:T(8,128)}', space=vmem, size = 0x1000, scoped, tag = 'scratch operand']
  %s0 = inlined_call_operand.vmem [shape: f32[8,32], index: 0, kind: input, shape index: {}]
  %s1 = inlined_call_operand.vmem [shape: f32[32,32], index: 1, kind: input, shape index: {}]
  %s2 = inlined_call_operand.hbm [shape: f32[8,32], index: 2, kind: output, shape index: {}]
  %s3 = sld [smem:[#allocation0]]
  $region26: #{gptj_attention.5} parent=0
    _
  %s5 = ssub.s32 1, %s3
  %s6 = scalar_select 0, %s5, %s3
  $region1: #{gptj_attention.5} parent=0
    #allocation3 [shape = 'u8[4096]{0}', space=vmem, size = 0x1000, scoped, tag = 'output window, operand 0, single buffered']
    #allocation4 [shape = 's32[1]{0}', space=sflag, size = 0x4, scoped, tag = 'scoped memory for gptj_attention.5']
    %7 = vsyncpa [#allocation4], 0
    // Predicated region
    $region2: #{gptj_attention.5} parent=1 // pred_check
      _
    $region3: #{gptj_attention.5} parent=1 // pred_check_branch
      %9 = sbr.rel (0) target = $region5
    $region4: #{gptj_attention.5} parent=1 // pred_region
      _
    $region5: #{gptj_attention.5} parent=1 // pred_fallthru
      _
    // Predicated region
    $region6: #{gptj_attention.5} parent=1 // pred_check
      _
    $region7: #{gptj_attention.5} parent=1 // pred_check_branch
      %11 = sbr.rel (0) target = $region9
    $region8: #{gptj_attention.5} parent=1 // pred_region
      _
    $region9: #{gptj_attention.5} parent=1 // pred_fallthru
      _
    %p12 = scmp.eq.s32.totalorder 0, 0
    // Predicated region
    $region10: #{gptj_attention.5} parent=1 // pred_check
      %p13 = pneg %p12
    $region11: #{gptj_attention.5} parent=1 // pred_check_branch
      %15 = sbr.rel (%p13) target = $region13
    $region12: #{gptj_attention.5} parent=1 // pred_region
      %vm16 = vcmask 261120
      %17 = vst.msk [vmem:[#allocation2] sm:$0xff] %vm16, 0.0
    $region13: #{gptj_attention.5} parent=1 // pred_fallthru
      _
    %v18 = vld [vmem:[#allocation2] sm:$0xff]
    %v19 = vld [vmem:[%s0] sm:$0xff]
    %v20 = vld [vmem:[%s1] sm:$0xff]
    %v21 = vld [vmem:[%s1 + $0x8] sm:$0xff]
    %v22 = vld [vmem:[%s1 + $0x10] sm:$0xff]
    %v23 = vld [vmem:[%s1 + $0x18] sm:$0xff]
    %vm24 = vcmask 261120
    %v26 = vsel %vm24, %v19, 0
    %28 = vmatprep.subr.mxu0 0.0
    %29 = vmatpush1.msra.mxu0 %v20
    %30 = vmatprep.subr.mxu0 0.0
    %31 = vmatpush1.msra.mxu0 %v21
    %32 = vmatprep.subr.mxu0 0.0
    %33 = vmatpush1.msra.mxu0 %v22
    %34 = vmatprep.subr.mxu0 0.0
    %35 = vmatpush1.msra.mxu0 %v23
    %36 = vmatprep.subr.mxu0 0.0
    %37 = vmatpush1.msra.mxu0 0.0
    %38 = vmatprep.subr.mxu0 0.0
    %39 = vmatpush1.msra.mxu0 0.0
    %40 = vmatprep.subr.mxu0 0.0
    %41 = vmatpush1.msra.mxu0 0.0
    %42 = vmatprep.subr.mxu0 0.0
    %43 = vmatpush1.msra.mxu0 0.0
    %44 = vmatprep.subr.mxu0 0.0
    %45 = vmatpush1.msra.mxu0 0.0
    %46 = vmatprep.subr.mxu0 0.0
    %47 = vmatpush1.msra.mxu0 0.0
    %48 = vmatprep.subr.mxu0 0.0
    %49 = vmatpush1.msra.mxu0 0.0
    %50 = vmatprep.subr.mxu0 0.0
    %51 = vmatpush1.msra.mxu0 0.0
    %52 = vmatprep.subr.mxu0 0.0
    %53 = vmatpush1.msra.mxu0 0.0
    %54 = vmatprep.subr.mxu0 0.0
    %55 = vmatpush1.msra.mxu0 0.0
    %56 = vmatprep.subr.mxu0 0.0
    %57 = vmatpush1.msra.mxu0 0.0
    %58 = vmatprep.subr.mxu0 0.0
    %59 = vmatpush1.msra.mxu0 0.0
    %60 = vmatprep.subr.mxu0 0.0
    %61 = vmatpush1.msra.mxu0 0.0
    %62 = vmatprep.subr.mxu0 0.0
    %63 = vmatpush1.msra.mxu0 0.0
    %64 = vmatprep.subr.mxu0 0.0
    %65 = vmatpush1.msra.mxu0 0.0
    %66 = vmatprep.subr.mxu0 0.0
    %67 = vmatpush1.msra.mxu0 0.0
    %68 = vmatprep.subr.mxu0 0.0
    %69 = vmatpush1.msra.mxu0 0.0
    %70 = vmatprep.subr.mxu0 0.0
    %71 = vmatpush1.msra.mxu0 0.0
    %72 = vmatprep.subr.mxu0 0.0
    %73 = vmatpush1.msra.mxu0 0.0
    %74 = vmatprep.subr.mxu0 0.0
    %75 = vmatpush1.msra.mxu0 0.0
    %76 = vmatprep.subr.mxu0 0.0
    %77 = vmatpush1.msra.mxu0 0.0
    %78 = vmatprep.subr.mxu0 0.0
    %79 = vmatpush1.msra.mxu0 0.0
    %80 = vmatprep.subr.mxu0 0.0
    %81 = vmatpush1.msra.mxu0 0.0
    %82 = vmatprep.subr.mxu0 0.0
    %83 = vmatpush1.msra.mxu0 0.0
    %84 = vmatprep.subr.mxu0 0.0
    %85 = vmatpush1.msra.mxu0 0.0
    %86 = vmatprep.subr.mxu0 0.0
    %87 = vmatpush1.msra.mxu0 0.0
    %88 = vmatprep.subr.mxu0 0.0
    %89 = vmatpush1.msra.mxu0 0.0
    %90 = vmatprep.subr.mxu0 0.0
    %91 = vmatpush1.msra.mxu0 0.0
    %92 = vmatprep.mubr.f32.mxu0 0.0
    %93 = vmatmul.mubr.f32.gmra.mrb[0].mxu0 %v26
    %v94 = vpop.f32.mrb[0].mxu0
    %v95 = vadd.f32 0.0, %v94
    %v96 = vpop.f32.mrb[0].mxu0
    %97 = vdwg.mxu0
    %v98 = vadd.f32 %v18, %v95
    %99 = vst.msk [vmem:[#allocation2] sm:$0xff] %vm24, %v98
    // Predicated region
    $region14: #{gptj_attention.5} parent=1 // pred_check
      %p100 = pneg %p12
    $region15: #{gptj_attention.5} parent=1 // pred_check_branch
      %102 = sbr.rel (%p100) target = $region17
    $region16: #{gptj_attention.5} parent=1 // pred_region
      %v103 = vld [vmem:[#allocation2] sm:$0xff]
      %104 = vst.msk [vmem:[#allocation3] sm:$0xff] %vm24, %v103
    $region17: #{gptj_attention.5} parent=1 // pred_fallthru
      _
    // Predicated region
    $region18: #{gptj_attention.5} parent=1 // pred_check
      _
    $region19: #{gptj_attention.5} parent=1 // pred_check_branch
      %106 = sbr.rel (0) target = $region21
    $region20: #{gptj_attention.5} parent=1 // pred_region
      %s108 = ssub.s32 128, 128
      %109 = vsyncadd [#allocation4], %s108
      %s111 = sshll.u32 [#allocation3], 4
      %s112 = int_to_ptr.vmem [resolvable:$true] %s111
      %114 = dma.vmem_to_hbm [thread:$0]  %s112, 128, %s2, [#allocation4]
    $region21: #{gptj_attention.5} parent=1 // pred_fallthru
      _
    // Predicated region
    $region22: #{gptj_attention.5} parent=1 // pred_check
      _
    $region23: #{gptj_attention.5} parent=1 // pred_check_branch
      %116 = sbr.rel (0) target = $region25
    $region24: #{gptj_attention.5} parent=1 // pred_region
      %117 = dma.done [#allocation4], 128
    $region25: #{gptj_attention.5} parent=1 // pred_fallthru
      _
    %118 = vsyncpa [#allocation4], 1

// kernel: gptj_attention.4
$region0: #{gptj_attention.4}
  #allocation0 [shape = 'u32[]', space=smem, size = 0x4, offset = 0x4, fixed_abs, tag = 'smem constant byte address 0x4 - core index']
  #allocation1 [shape = 'u32[144,128]{1,0:T(1,128)}', space=vmem, size = 0x12000, scoped, tag = 'internal scratch']
  #allocation2 [shape = 'f32[8,1]{1,0:T(8,128)}', space=vmem, size = 0x1000, scoped, tag = 'scratch operand']
  #allocation3 [shape = 'f32[8,1]{1,0:T(8,128)}', space=vmem, size = 0x1000, scoped, tag = 'scratch operand']
  #allocation4 [shape = 'f32[8,8]{1,0:T(8,128)}', space=vmem, size = 0x1000, scoped, tag = 'scratch operand']
  %s0 = inlined_call_operand.vmem [shape: f32[4,8,8], index: 0, kind: input, shape index: {}]
  %s1 = inlined_call_operand.vmem [shape: f32[4,8,8], index: 1, kind: input, shape index: {}]
  %s2 = inlined_call_operand.vmem [shape: f32[4,8,8], index: 2, kind: input, shape index: {}]
  %s3 = inlined_call_operand.vmem [shape: f32[4,8,8], index: 3, kind: output, shape index: {}]
  %s4 = sld [smem:[#allocation0]]
  $region57: #{gptj_attention.4} parent=0
    _
  %s6 = ssub.s32 1, %s4
  %s7 = scalar_select 0, %s6, %s4
  loop: start=0, step=1, limit=6
  $region2: #{gptj_attention.4} parent=0 // loop_pre_header
    _
  $region3: #{gptj_attention.4} parent=0 // loop_header
    %s9 = sphi 0, %s13
    %p10 = scmp.ge.s32.totalorder %s9, 6
    %s16 = sphi 0, %s35
    %s17 = sphi 0, %s31
    %s18 = sphi 0, %s27
    %s19 = sphi 0, %s16
    %s20 = sphi 0, %s17
    %s21 = sphi 0, %s18
    %s22 = sphi 0, %s19
    %s23 = sphi 0, %s20
    %s24 = sphi 0, %s21
    %s40 = sphi 0, %s42
    %s43 = sphi 0, %s40
    %s44 = sphi 0, %s43
    %s60 = sphi 0, %s44
    %s78 = sphi 0, %s80
    %s81 = sphi 0, %s78
    %s82 = sphi 0, %s81
    %s98 = sphi 0, %s82
    %s116 = sphi 0, %s118
    %s119 = sphi 0, %s116
    %s120 = sphi 0, %s119
    %s136 = sphi 0, %s120
    %s144 = sphi 0, %s146
    %s147 = sphi 0, %s144
    %s148 = sphi 0, %s147
    %s164 = sphi 0, %s148
  $region4: #{gptj_attention.4} parent=0 // loop_header_branch
    %12 = sbr.rel (%p10) target = $region8
  $region5: #{gptj_attention.4} parent=0 // loop_body
    %s14 = ssub.s32 %s9, 1
    %s15 = ssub.s32 %s9, 2
    %s25 = sadd.s32 1, %s18
    %p26 = scmp.ge.s32.totalorder %s25, 1
    %s27 = scalar_select %p26, 0, %s25
    %s28 = sadd.s32 1, %s17
    %s29 = scalar_select %p26, %s28, %s17
    %p30 = scmp.ge.s32.totalorder %s29, 1
    %s31 = scalar_select %p30, 0, %s29
    %s32 = sadd.s32 1, %s16
    %s33 = scalar_select %p30, %s32, %s16
    %p34 = scmp.ge.s32.totalorder %s33, 4
    %s35 = scalar_select %p34, 0, %s33
    %s36 = ssub.s32 %s16, %s35
    %s37 = ssub.s32 %s17, %s31
    %s38 = sor.u32 %s36, %s37
    %p39 = scmp.eq.s32.totalorder %s38, 0
    %s41 = sadd.s32 %s40, 1
    %s42 = scalar_select %p39, %s40, %s41
    %p45 = pneg %p39
    %p46 = scmp.eq.s32.totalorder %s9, 3
    %p47 = por %p45, %p46
    %p48 = scmp.ne.s32.totalorder %s40, %s43
    %p49 = scmp.eq.s32.totalorder %s9, 0
    %p50 = por %p48, %p49
    %p51 = scmp.ne.s32.totalorder %s40, %s43
    %p52 = scmp.eq.s32.totalorder %s14, 3
    %p53 = por %p51, %p52
    %p54 = scmp.ne.s32.totalorder %s43, %s44
    %p55 = scmp.eq.s32.totalorder %s14, 0
    %p56 = por %p54, %p55
    %p57 = scmp.ne.s32.totalorder %s43, %s44
    %p58 = scmp.eq.s32.totalorder %s15, 3
    %p59 = por %p57, %p58
    %p61 = scmp.ne.s32.totalorder %s44, %s60
    %p62 = scmp.eq.s32.totalorder %s15, 0
    %p63 = por %p61, %p62
    %s64 = smul.u32 %s18, 8
    %s65 = smul.u32 %s17, 8
    %s66 = sadd.s32 %s65, 7
    %p67 = scmp.le.s32.totalorder %s64, %s66
    %s68 = scalar_select %p67, %s18, 0
    %s69 = smul.u32 %s27, 8
    %s70 = smul.u32 %s31, 8
    %s71 = sadd.s32 %s70, 7
    %p72 = scmp.le.s32.totalorder %s69, %s71
    %s73 = scalar_select %p72, %s27, 0
    %s74 = ssub.s32 %s16, %s35
    %s75 = ssub.s32 %s68, %s73
    %s76 = sor.u32 %s74, %s75
    %p77 = scmp.eq.s32.totalorder %s76, 0
    %s79 = sadd.s32 %s78, 1
    %s80 = scalar_select %p77, %s78, %s79
    %p83 = pneg %p77
    %p84 = scmp.eq.s32.totalorder %s9, 3
    %p85 = por %p83, %p84
    %p86 = scmp.ne.s32.totalorder %s78, %s81
    %p87 = scmp.eq.s32.totalorder %s9, 0
    %p88 = por %p86, %p87
    %p89 = scmp.ne.s32.totalorder %s78, %s81
    %p90 = scmp.eq.s32.totalorder %s14, 3
    %p91 = por %p89, %p90
    %p92 = scmp.ne.s32.totalorder %s81, %s82
    %p93 = scmp.eq.s32.totalorder %s14, 0
    %p94 = por %p92, %p93
    %p95 = scmp.ne.s32.totalorder %s81, %s82
    %p96 = scmp.eq.s32.totalorder %s15, 3
    %p97 = por %p95, %p96
    %p99 = scmp.ne.s32.totalorder %s82, %s98
    %p100 = scmp.eq.s32.totalorder %s15, 0
    %p101 = por %p99, %p100
    %s102 = smul.u32 %s18, 8
    %s103 = smul.u32 %s17, 8
    %s104 = sadd.s32 %s103, 7
    %p105 = scmp.le.s32.totalorder %s102, %s104
    %s106 = scalar_select %p105, %s18, 0
    %s107 = smul.u32 %s27, 8
    %s108 = smul.u32 %s31, 8
    %s109 = sadd.s32 %s108, 7
    %p110 = scmp.le.s32.totalorder %s107, %s109
    %s111 = scalar_select %p110, %s27, 0
    %s112 = ssub.s32 %s16, %s35
    %s113 = ssub.s32 %s106, %s111
    %s114 = sor.u32 %s112, %s113
    %p115 = scmp.eq.s32.totalorder %s114, 0
    %s117 = sadd.s32 %s116, 1
    %s118 = scalar_select %p115, %s116, %s117
    %p121 = pneg %p115
    %p122 = scmp.eq.s32.totalorder %s9, 3
    %p123 = por %p121, %p122
    %p124 = scmp.ne.s32.totalorder %s116, %s119
    %p125 = scmp.eq.s32.totalorder %s9, 0
    %p126 = por %p124, %p125
    %p127 = scmp.ne.s32.totalorder %s116, %s119
    %p128 = scmp.eq.s32.totalorder %s14, 3
    %p129 = por %p127, %p128
    %p130 = scmp.ne.s32.totalorder %s119, %s120
    %p131 = scmp.eq.s32.totalorder %s14, 0
    %p132 = por %p130, %p131
    %p133 = scmp.ne.s32.totalorder %s119, %s120
    %p134 = scmp.eq.s32.totalorder %s15, 3
    %p135 = por %p133, %p134
    %p137 = scmp.ne.s32.totalorder %s120, %s136
    %p138 = scmp.eq.s32.totalorder %s15, 0
    %p139 = por %p137, %p138
    %s140 = ssub.s32 %s16, %s35
    %s141 = ssub.s32 %s17, %s31
    %s142 = sor.u32 %s140, %s141
    %p143 = scmp.eq.s32.totalorder %s142, 0
    %s145 = sadd.s32 %s144, 1
    %s146 = scalar_select %p143, %s144, %s145
    %p149 = pneg %p143
    %p150 = scmp.eq.s32.totalorder %s9, 3
    %p151 = por %p149, %p150
    %p152 = scmp.ne.s32.totalorder %s144, %s147
    %p153 = scmp.eq.s32.totalorder %s9, 0
    %p154 = por %p152, %p153
    %p155 = scmp.ne.s32.totalorder %s144, %s147
    %p156 = scmp.eq.s32.totalorder %s14, 3
    %p157 = por %p155, %p156
    %p158 = scmp.ne.s32.totalorder %s147, %s148
    %p159 = scmp.eq.s32.totalorder %s14, 0
    %p160 = por %p158, %p159
    %p161 = scmp.ne.s32.totalorder %s147, %s148
    %p162 = scmp.eq.s32.totalorder %s15, 3
    %p163 = por %p161, %p162
    %p165 = scmp.ne.s32.totalorder %s148, %s164
    %p166 = scmp.eq.s32.totalorder %s15, 0
    %p167 = por %p165, %p166
    %p168 = scmp.le.s32.totalorder 1, %s9
    %p169 = scmp.lt.s32.totalorder %s9, 5
    %p170 = pnand %p168, %p169
    %p171 = pneg %p170
    // Predicated region
    $region9: #{gptj_attention.4} parent=5 // pred_check
      _
    $region10: #{gptj_attention.4} parent=5 // pred_check_branch
      %173 = sbr.rel (%p170) target = $region12
    $region11: #{gptj_attention.4} parent=5 // pred_region
      %s174 = ssub.s32 %s9, 1
    $region12: #{gptj_attention.4} parent=5 // pred_fallthru
      _
    %p175 = scmp.lt.s32.totalorder %s9, 4
    // Predicated region
    $region13: #{gptj_attention.4} parent=5 // pred_check
      %p176 = pneg %p175
    $region14: #{gptj_attention.4} parent=5 // pred_check_branch
      %178 = sbr.rel (%p176) target = $region16
    $region15: #{gptj_attention.4} parent=5 // pred_region
      // Predicated region
      $region17: #{gptj_attention.4} parent=15 // pred_check
        %p179 = pneg %p50
      $region18: #{gptj_attention.4} parent=15 // pred_check_branch
        %181 = sbr.rel (%p179) target = $region20
      $region19: #{gptj_attention.4} parent=15 // pred_region
        %p182 = scmp.lt.s32.totalorder %s16, 3
        %s183 = scalar_select %p182, %s16, 3
        %p184 = scmp.lt.s32.totalorder %s17, 0
        %s185 = scalar_select %p184, %s17, 0
        %s186 = sadd.s32 %s185, %s183
        %s187 = smul.addr %s186, 8
        %s188 = scalar_lea.vmem %s0, %s187
      $region20: #{gptj_attention.4} parent=15 // pred_fallthru
        _
      // Predicated region
      $region21: #{gptj_attention.4} parent=15 // pred_check
        %p189 = pneg %p88
      $region22: #{gptj_attention.4} parent=15 // pred_check_branch
        %191 = sbr.rel (%p189) target = $region24
      $region23: #{gptj_attention.4} parent=15 // pred_region
        %s192 = smul.u32 %s18, 8
        %s193 = smul.u32 %s17, 8
        %s194 = sadd.s32 %s193, 7
        %p195 = scmp.le.s32.totalorder %s192, %s194
        %s196 = scalar_select %p195, %s18, 0
        %p197 = scmp.lt.s32.totalorder %s16, 3
        %s198 = scalar_select %p197, %s16, 3
        %p199 = scmp.lt.s32.totalorder %s196, 0
        %s200 = scalar_select %p199, %s196, 0
        %s201 = sadd.s32 %s200, %s198
        %s202 = smul.addr %s201, 8
        %s203 = scalar_lea.vmem %s1, %s202
        %s204 = smul.u32 %s18, 8
        %s205 = smul.u32 %s17, 8
        %s206 = sadd.s32 %s205, 7
        %p207 = scmp.le.s32.totalorder %s204, %s206
        %s208 = scalar_select %p207, %s18, 0
      $region24: #{gptj_attention.4} parent=15 // pred_fallthru
        _
      // Predicated region
      $region25: #{gptj_attention.4} parent=15 // pred_check
        %p209 = pneg %p126
      $region26: #{gptj_attention.4} parent=15 // pred_check_branch
        %211 = sbr.rel (%p209) target = $region28
      $region27: #{gptj_attention.4} parent=15 // pred_region
        %s212 = smul.u32 %s18, 8
        %s213 = smul.u32 %s17, 8
        %s214 = sadd.s32 %s213, 7
        %p215 = scmp.le.s32.totalorder %s212, %s214
        %s216 = scalar_select %p215, %s18, 0
        %p217 = scmp.lt.s32.totalorder %s16, 3
        %s218 = scalar_select %p217, %s16, 3
        %p219 = scmp.lt.s32.totalorder %s216, 0
        %s220 = scalar_select %p219, %s216, 0
        %s221 = sadd.s32 %s220, %s218
        %s222 = smul.addr %s221, 8
        %s223 = scalar_lea.vmem %s2, %s222
        %s224 = smul.u32 %s18, 8
        %s225 = smul.u32 %s17, 8
        %s226 = sadd.s32 %s225, 7
        %p227 = scmp.le.s32.totalorder %s224, %s226
        %s228 = scalar_select %p227, %s18, 0
      $region28: #{gptj_attention.4} parent=15 // pred_fallthru
        _
    $region16: #{gptj_attention.4} parent=5 // pred_fallthru
      _
    %p229 = scmp.le.s32.totalorder 1, %s9
    %p230 = scmp.lt.s32.totalorder %s9, 5
    %p231 = pnand %p229, %p230
    %p232 = pneg %p231
    // Predicated region
    $region29: #{gptj_attention.4} parent=5 // pred_check
      _
    $region30: #{gptj_attention.4} parent=5 // pred_check_branch
      %234 = sbr.rel (%p231) target = $region32
    $region31: #{gptj_attention.4} parent=5 // pred_region
      %s235 = ssub.s32 %s9, 1
      %p236 = scmp.lt.s32.totalorder %s19, 3
      %s237 = scalar_select %p236, %s19, 3
      %p238 = scmp.lt.s32.totalorder %s20, 0
      %s239 = scalar_select %p238, %s20, 0
      %s240 = sadd.s32 %s239, %s237
      %s241 = smul.addr %s240, 8
      %s242 = scalar_lea.vmem %s0, %s241
      %p243 = pneg %p56
      %p244 = pneg %p53
      %s245 = smul.u32 %s21, 8
      %s246 = smul.u32 %s20, 8
      %s247 = sadd.s32 %s246, 7
      %p248 = scmp.le.s32.totalorder %s245, %s247
      %s249 = scalar_select %p248, %s21, 0
      %p250 = scmp.lt.s32.totalorder %s19, 3
      %s251 = scalar_select %p250, %s19, 3
      %p252 = scmp.lt.s32.totalorder %s249, 0
      %s253 = scalar_select %p252, %s249, 0
      %s254 = sadd.s32 %s253, %s251
      %s255 = smul.addr %s254, 8
      %s256 = scalar_lea.vmem %s1, %s255
      %p257 = pneg %p94
      %p258 = pneg %p91
      %s259 = smul.u32 %s21, 8
      %s260 = smul.u32 %s20, 8
      %s261 = sadd.s32 %s260, 7
      %p262 = scmp.le.s32.totalorder %s259, %s261
      %s263 = scalar_select %p262, %s21, 0
      %p264 = scmp.lt.s32.totalorder %s19, 3
      %s265 = scalar_select %p264, %s19, 3
      %p266 = scmp.lt.s32.totalorder %s263, 0
      %s267 = scalar_select %p266, %s263, 0
      %s268 = sadd.s32 %s267, %s265
      %s269 = smul.addr %s268, 8
      %s270 = scalar_lea.vmem %s2, %s269
      %p271 = pneg %p132
      %p272 = pneg %p129
      %p273 = pneg %p160
      %p274 = pneg %p157
      %p275 = scmp.lt.s32.totalorder %s19, 3
      %s276 = scalar_select %p275, %s19, 3
      %p277 = scmp.lt.s32.totalorder %s20, 0
      %s278 = scalar_select %p277, %s20, 0
      %s279 = sadd.s32 %s278, %s276
      %s280 = smul.addr %s279, 8
      %s281 = scalar_lea.vmem %s3, %s280
      %p282 = scmp.lt.s32.totalorder %s19, 3
      %s283 = scalar_select %p282, %s19, 3
      %p284 = scmp.lt.s32.totalorder %s20, 0
      %s285 = scalar_select %p284, %s20, 0
      %s286 = sadd.s32 %s285, %s283
      %s287 = smul.addr %s286, 8
      %s288 = scalar_lea.vmem %s0, %s287
      %s289 = smul.u32 %s21, 8
      %s290 = smul.u32 %s20, 8
      %s291 = sadd.s32 %s290, 7
      %p292 = scmp.le.s32.totalorder %s289, %s291
      %s293 = scalar_select %p292, %s21, 0
      %p294 = scmp.lt.s32.totalorder %s19, 3
      %s295 = scalar_select %p294, %s19, 3
      %p296 = scmp.lt.s32.totalorder %s293, 0
      %s297 = scalar_select %p296, %s293, 0
      %s298 = sadd.s32 %s297, %s295
      %s299 = smul.addr %s298, 8
      %s300 = scalar_lea.vmem %s1, %s299
      %s301 = smul.u32 %s21, 8
      %s302 = smul.u32 %s20, 8
      %s303 = sadd.s32 %s302, 7
      %p304 = scmp.le.s32.totalorder %s301, %s303
      %s305 = scalar_select %p304, %s21, 0
      %s306 = smul.u32 %s21, 8
      %s307 = smul.u32 %s20, 8
      %s308 = sadd.s32 %s307, 7
      %p309 = scmp.le.s32.totalorder %s306, %s308
      %s310 = scalar_select %p309, %s21, 0
      %p311 = scmp.lt.s32.totalorder %s19, 3
      %s312 = scalar_select %p311, %s19, 3
      %p313 = scmp.lt.s32.totalorder %s310, 0
      %s314 = scalar_select %p313, %s310, 0
      %s315 = sadd.s32 %s314, %s312
      %s316 = smul.addr %s315, 8
      %s317 = scalar_lea.vmem %s2, %s316
      %s318 = smul.u32 %s21, 8
      %s319 = smul.u32 %s20, 8
      %s320 = sadd.s32 %s319, 7
      %p321 = scmp.le.s32.totalorder %s318, %s320
      %s322 = scalar_select %p321, %s21, 0
      %p323 = scmp.lt.s32.totalorder %s19, 3
      %s324 = scalar_select %p323, %s19, 3
      %p325 = scmp.lt.s32.totalorder %s20, 0
      %s326 = scalar_select %p325, %s20, 0
      %s327 = sadd.s32 %s326, %s324
      %s328 = smul.addr %s327, 8
      %s329 = scalar_lea.vmem %s3, %s328
      %p330 = scmp.eq.s32.totalorder %s21, 0
      // Predicated region
      $region33: #{gptj_attention.4} parent=31 // pred_check
        %p331 = pneg %p330
      $region34: #{gptj_attention.4} parent=31 // pred_check_branch
        %333 = sbr.rel (%p331) target = $region36
      $region35: #{gptj_attention.4} parent=31 // pred_region
        %vm334 = vcmask 7168
        %335 = vst.msk [vmem:[#allocation2] sm:$0xff] %vm334, -1e+30
        %336 = vst.msk [vmem:[#allocation3] sm:$0xff] %vm334, 0.0
        %vm337 = vcmask 64512
        %338 = vst.msk [vmem:[#allocation4] sm:$0xff] %vm337, 0.0
      $region36: #{gptj_attention.4} parent=31 // pred_fallthru
        _
      %s339 = smul.u32 %s20, 8
      %s340 = smul.u32 %s21, 8
      %s341 = sadd.s32 %s339, 7
      %p342 = scmp.le.s32.totalorder %s340, %s341
      // Predicated region
      $region37: #{gptj_attention.4} parent=31 // pred_check
        %p343 = pneg %p342
      $region38: #{gptj_attention.4} parent=31 // pred_check_branch
        %345 = sbr.rel (%p343) target = $region40
      $region39: #{gptj_attention.4} parent=31 // pred_region
        %v346 = vld [vmem:[%s288] sm:$0xff]
        %v347 = vld [vmem:[%s300] sm:$0xff]
        %v348 = vld [vmem:[%s317] sm:$0xff]
        %vm349 = vcmask 64512
        %v351 = vsel %vm349, %v346, 0
        %v354 = vsel %vm349, %v347, 0
        %356 = vmatprep.subr.mxu0 0.0
        %357 = vmatpush1.xpose.msra.mxu0 %v354
        %358 = vmatprep.subr.mxu0 0.0
        %359 = vmatpush1.xpose.msra.mxu0 0.0
        %360 = vmatprep.subr.mxu0 0.0
        %361 = vmatpush1.xpose.msra.mxu0 0.0
        %362 = vmatprep.subr.mxu0 0.0
        %363 = vmatpush1.xpose.msra.mxu0 0.0
        %364 = vmatprep.subr.mxu0 0.0
        %365 = vmatpush1.xpose.msra.mxu0 0.0
        %366 = vmatprep.subr.mxu0 0.0
        %367 = vmatpush1.xpose.msra.mxu0 0.0
        %368 = vmatprep.subr.mxu0 0.0
        %369 = vmatpush1.xpose.msra.mxu0 0.0
        %370 = vmatprep.subr.mxu0 0.0
        %371 = vmatpush1.xpose.msra.mxu0 0.0
        %372 = vmatprep.subr.mxu0 0.0
        %373 = vmatpush1.xpose.msra.mxu0 0.0
        %374 = vmatprep.subr.mxu0 0.0
        %375 = vmatpush1.xpose.msra.mxu0 0.0
        %376 = vmatprep.subr.mxu0 0.0
        %377 = vmatpush1.xpose.msra.mxu0 0.0
        %378 = vmatprep.subr.mxu0 0.0
        %379 = vmatpush1.xpose.msra.mxu0 0.0
        %380 = vmatprep.subr.mxu0 0.0
        %381 = vmatpush1.xpose.msra.mxu0 0.0
        %382 = vmatprep.subr.mxu0 0.0
        %383 = vmatpush1.xpose.msra.mxu0 0.0
        %384 = vmatprep.subr.mxu0 0.0
        %385 = vmatpush1.xpose.msra.mxu0 0.0
        %386 = vmatprep.subr.mxu0 0.0
        %387 = vmatpush1.xpose.msra.mxu0 0.0
        %388 = vmatprep.subr.mxu0 0.0
        %389 = vmatpush1.xpose.msra.mxu0 0.0
        %390 = vmatprep.subr.mxu0 0.0
        %391 = vmatpush1.xpose.msra.mxu0 0.0
        %392 = vmatprep.subr.mxu0 0.0
        %393 = vmatpush1.xpose.msra.mxu0 0.0
        %394 = vmatprep.subr.mxu0 0.0
        %395 = vmatpush1.xpose.msra.mxu0 0.0
        %396 = vmatprep.subr.mxu0 0.0
        %397 = vmatpush1.xpose.msra.mxu0 0.0
        %398 = vmatprep.subr.mxu0 0.0
        %399 = vmatpush1.xpose.msra.mxu0 0.0
        %400 = vmatprep.subr.mxu0 0.0
        %401 = vmatpush1.xpose.msra.mxu0 0.0
        %402 = vmatprep.subr.mxu0 0.0
        %403 = vmatpush1.xpose.msra.mxu0 0.0
        %404 = vmatprep.subr.mxu0 0.0
        %405 = vmatpush1.xpose.msra.mxu0 0.0
        %406 = vmatprep.subr.mxu0 0.0
        %407 = vmatpush1.xpose.msra.mxu0 0.0
        %408 = vmatprep.subr.mxu0 0.0
        %409 = vmatpush1.xpose.msra.mxu0 0.0
        %410 = vmatprep.subr.mxu0 0.0
        %411 = vmatpush1.xpose.msra.mxu0 0.0
        %412 = vmatprep.subr.mxu0 0.0
        %413 = vmatpush1.xpose.msra.mxu0 0.0
        %414 = vmatprep.subr.mxu0 0.0
        %415 = vmatpush1.xpose.msra.mxu0 0.0
        %416 = vmatprep.subr.mxu0 0.0
        %417 = vmatpush1.xpose.msra.mxu0 0.0
        %418 = vmatprep.subr.mxu0 0.0
        %419 = vmatpush1.xpose.msra.mxu0 0.0
        %420 = vmatprep.mubr.f32.mxu0 0.0
        %421 = vmatmul.mubr.f32.gmra.mrb[0].mxu0 %v351
        %v422 = vpop.f32.mrb[0].mxu0
        %v423 = vadd.f32 0.0, %v422
        %v424 = vpop.f32.mrb[0].mxu0
        %425 = vdwg.mxu0
        %v426 = vmul.f32 %v423, 0.35355338
        %v427 = vlaneseq
        %v428 = vshrl.u32 %v427, 7
        %v429 = vstv %s339
        %v430 = vadd.s32 %v429, %v428
        %v431 = vlaneseq
        %v432 = vand.u32 %v431, 127
        %v433 = vstv %s340
        %v434 = vadd.s32 %v433, %v432
        %vm435 = vcmp.le.s32.totalorder %v434, %v430
        %v436 = vsel %vm435, %v426, -1e+30
        %v437 = vld [vmem:[#allocation2] sm:$0xff]
        %v438 = vsel %vm349, %v436, -inf
        %439 = vmax.xlane.f32.xlu0 %v438
        %v440 = vpop.xlane.xlu0 %439
        %v441 = vmax.f32 %v437, %v440
        %v442 = vsub.f32 %v437, %v441
        %v443 = vmul.f32 %v442, 1.442695
        %v444 = vpow.pop %v443
        %446 = vset.pattern.permute.xlu0 0
        %447 = vperm.xlu0 %446, %v441
        %v448 = vpop.permute.xlu0 %447
        %v450 = vsub.f32 %v436, %v448
        %v451 = vmul.f32 %v450, 1.442695
        %v452 = vpow.pop %v451
        %v453 = vld [vmem:[#allocation3] sm:$0xff]
        %v454 = vmul.f32 %v444, %v453
        %v455 = vsel %vm349, %v452, 0.0
        %456 = vadd.xlane.f32.xlu0 %v455
        %v457 = vpop.xlane.xlu0 %456
        %v458 = vadd.f32 %v454, %v457
        %vm459 = vcmask 7168
        %460 = vst.msk [vmem:[#allocation3] sm:$0xff] %vm459, %v458
        %v461 = vld [vmem:[#allocation4] sm:$0xff]
        %463 = vset.pattern.permute.xlu0 0
        %464 = vperm.xlu0 %463, %v444
        %v465 = vpop.permute.xlu0 %464
        %v467 = vmul.f32 %v465, %v461
        %v469 = vsel %vm349, %v452, 0
        %471 = vmatprep.subr.mxu0 0.0
        %472 = vmatpush1.msra.mxu0 %v348
        %473 = vmatprep.subr.mxu0 0.0
        %474 = vmatpush1.msra.mxu0 0.0
        %475 = vmatprep.subr.mxu0 0.0
        %476 = vmatpush1.msra.mxu0 0.0
        %477 = vmatprep.subr.mxu0 0.0
        %478 = vmatpush1.msra.mxu0 0.0
        %479 = vmatprep.subr.mxu0 0.0
        %480 = vmatpush1.msra.mxu0 0.0
        %481 = vmatprep.subr.mxu0 0.0
        %482 = vmatpush1.msra.mxu0 0.0
        %483 = vmatprep.subr.mxu0 0.0
        %484 = vmatpush1.msra.mxu0 0.0
        %485 = vmatprep.subr.mxu0 0.0
        %486 = vmatpush1.msra.mxu0 0.0
        %487 = vmatprep.subr.mxu0 0.0
        %488 = vmatpush1.msra.mxu0 0.0
        %489 = vmatprep.subr.mxu0 0.0
        %490 = vmatpush1.msra.mxu0 0.0
        %491 = vmatprep.subr.mxu0 0.0
        %492 = vmatpush1.msra.mxu0 0.0
        %493 = vmatprep.subr.mxu0 0.0
        %494 = vmatpush1.msra.mxu0 0.0
        %495 = vmatprep.subr.mxu0 0.0
        %496 = vmatpush1.msra.mxu0 0.0
        %497 = vmatprep.subr.mxu0 0.0
        %498 = vmatpush1.msra.mxu0 0.0
        %499 = vmatprep.subr.mxu0 0.0
        %500 = vmatpush1.msra.mxu0 0.0
        %501 = vmatprep.subr.mxu0 0.0
        %502 = vmatpush1.msra.mxu0 0.0
        %503 = vmatprep.subr.mxu0 0.0
        %504 = vmatpush1.msra.mxu0 0.0
        %505 = vmatprep.subr.mxu0 0.0
        %506 = vmatpush1.msra.mxu0 0.0
        %507 = vmatprep.subr.mxu0 0.0
        %508 = vmatpush1.msra.mxu0 0.0
        %509 = vmatprep.subr.mxu0 0.0
        %510 = vmatpush1.msra.mxu0 0.0
        %511 = vmatprep.subr.mxu0 0.0
        %512 = vmatpush1.msra.mxu0 0.0
        %513 = vmatprep.subr.mxu0 0.0
        %514 = vmatpush1.msra.mxu0 0.0
        %515 = vmatprep.subr.mxu0 0.0
        %516 = vmatpush1.msra.mxu0 0.0
        %517 = vmatprep.subr.mxu0 0.0
        %518 = vmatpush1.msra.mxu0 0.0
        %519 = vmatprep.subr.mxu0 0.0
        %520 = vmatpush1.msra.mxu0 0.0
        %521 = vmatprep.subr.mxu0 0.0
        %522 = vmatpush1.msra.mxu0 0.0
        %523 = vmatprep.subr.mxu0 0.0
        %524 = vmatpush1.msra.mxu0 0.0
        %525 = vmatprep.subr.mxu0 0.0
        %526 = vmatpush1.msra.mxu0 0.0
        %527 = vmatprep.subr.mxu0 0.0
        %528 = vmatpush1.msra.mxu0 0.0
        %529 = vmatprep.subr.mxu0 0.0
        %530 = vmatpush1.msra.mxu0 0.0
        %531 = vmatprep.subr.mxu0 0.0
        %532 = vmatpush1.msra.mxu0 0.0
        %533 = vmatprep.subr.mxu0 0.0
        %534 = vmatpush1.msra.mxu0 0.0
        %535 = vmatprep.mubr.f32.mxu0 0.0
        %536 = vmatmul.mubr.f32.gmra.mrb[0].mxu0 %v469
        %v537 = vpop.f32.mrb[0].mxu0
        %v538 = vadd.f32 0.0, %v537
        %v539 = vpop.f32.mrb[0].mxu0
        %540 = vdwg.mxu0
        %v541 = vadd.f32 %v467, %v538
        %542 = vst.msk [vmem:[#allocation4] sm:$0xff] %vm349, %v541
        %543 = vst.msk [vmem:[#allocation2] sm:$0xff] %vm459, %v441
      $region40: #{gptj_attention.4} parent=31 // pred_fallthru
        _
      // Predicated region
      $region41: #{gptj_attention.4} parent=31 // pred_check
        %p544 = pneg %p330
      $region42: #{gptj_attention.4} parent=31 // pred_check_branch
        %546 = sbr.rel (%p544) target = $region44
      $region43: #{gptj_attention.4} parent=31 // pred_region
        %v547 = vld [vmem:[#allocation3] sm:$0xff]
        %v548 = vrcp.pop %v547
        %v549 = vld [vmem:[#allocation4] sm:$0xff]
        %551 = vset.pattern.permute.xlu0 0
        %552 = vperm.xlu0 %551, %v548
        %v553 = vpop.permute.xlu0 %552
        %v555 = vmul.f32 %v549, %v553
        %vm556 = vcmask 64512
        %557 = vst.msk [vmem:[%s329] sm:$0xff] %vm556, %v555
      $region44: #{gptj_attention.4} parent=31 // pred_fallthru
        _
      %p558 = scmp.lt.s32.totalorder %s19, 3
      %s559 = scalar_select %p558, %s19, 3
      %p560 = scmp.lt.s32.totalorder %s20, 0
      %s561 = scalar_select %p560, %s20, 0
      %s562 = sadd.s32 %s561, %s559
      %s563 = smul.addr %s562, 8
      %s564 = scalar_lea.vmem %s3, %s563
      // Predicated region
      $region45: #{gptj_attention.4} parent=31 // pred_check
        %p565 = pneg %p157
      $region46: #{gptj_attention.4} parent=31 // pred_check_branch
        %567 = sbr.rel (%p565) target = $region48
      $region47: #{gptj_attention.4} parent=31 // pred_region
        _
      $region48: #{gptj_attention.4} parent=31 // pred_fallthru
        _
    $region32: #{gptj_attention.4} parent=5 // pred_fallthru
      _
    %p568 = scmp.le.s32.totalorder 2, %s9
    // Predicated region
    $region49: #{gptj_attention.4} parent=5 // pred_check
      %p569 = pneg %p568
    $region50: #{gptj_attention.4} parent=5 // pred_check_branch
      %571 = sbr.rel (%p569) target = $region52
    $region51: #{gptj_attention.4} parent=5 // pred_region
      %s572 = ssub.s32 %s9, 2
      // Predicated region
      $region53: #{gptj_attention.4} parent=51 // pred_check
        %p573 = pneg %p163
      $region54: #{gptj_attention.4} parent=51 // pred_check_branch
        %575 = sbr.rel (%p573) target = $region56
      $region55: #{gptj_attention.4} parent=51 // pred_region
        %p576 = scmp.lt.s32.totalorder %s22, 3
        %s577 = scalar_select %p576, %s22, 3
        %p578 = scmp.lt.s32.totalorder %s23, 0
        %s579 = scalar_select %p578, %s23, 0
        %s580 = sadd.s32 %s579, %s577
        %s581 = smul.addr %s580, 8
        %s582 = scalar_lea.vmem %s3, %s581
      $region56: #{gptj_attention.4} parent=51 // pred_fallthru
        _
    $region52: #{gptj_attention.4} parent=5 // pred_fallthru
      _
  $region6: #{gptj_attention.4} parent=0 // loop_footer
    %s13 = sadd.s32 1, %s9
  $region7: #{gptj_attention.4} parent=0 // loop_footer_branch
    %8 = sbr.rel target = $region3
  $region8: #{gptj_attention.4} parent=0 // loop_exit
    _

</llo_original>
